<compile_context>
chip_gen: v7x
topology: tpu7x:2x2x1
jax: 0.10.0
libtpu: 0.0.40
codegen_flags: <defaults>
</compile_context>

<pallas_src>
import functools

import jax
import jax.numpy as jnp
from jax.experimental import pallas as pl
from jax.experimental.pallas import tpu as pltpu


def _channel_attention_kernel(x_ref, w1t_ref, w2t_ref, o_ref, *, inv_hw):
    # x_ref block: (Bt, C, HW) float32 (HW may be lane-unaligned; Mosaic masks
    # the partial-lane vreg in the reductions and the final store).
    x = x_ref[...]
    w1t = w1t_ref[...]                                   # (C, C//16)
    w2t = w2t_ref[...]                                   # (C//16, C)

    # Global pooling over the spatial lane axis.
    avg = jnp.sum(x, axis=-1) * inv_hw                   # (Bt, C)
    mx = jnp.max(x, axis=-1)                             # (Bt, C)

    # Shared bias-free 2-layer MLP (1x1 convs on a 1x1 map == dense layers).
    def fc(p):                                           # p: (Bt, C)
        h = jnp.maximum(
            jnp.dot(p, w1t, preferred_element_type=jnp.float32), 0.0)
        return jnp.dot(h, w2t, preferred_element_type=jnp.float32)

    scale = jax.nn.sigmoid(fc(avg) + fc(mx))             # (Bt, C)

    # Broadcast fuses into the vmul (no (Bt, C, HW) scale slab materialized).
    o_ref[...] = x * scale[:, :, None]


def _cdiv(a, b):
    return -(-a // b)


def _choose_block_batch(n, c, hw, *, target_tile_bytes):
    """Largest Bt whose (Bt, C, HW) f32 tile fits the target, preferring a grid
    with >= 2 (and ideally an even number of) steps for 2-TC chips (v7x)."""
    per_batch_bytes = c * hw * 4
    bt = max(1, min(n, int(target_tile_bytes // per_batch_bytes)))

    def steps(b):
        return _cdiv(n, b)

    # Keep >= 2 grid steps when possible so both TensorCores get work.
    if n >= 2 and steps(bt) < 2:
        bt = (n + 1) // 2
    # Prefer an even step count (2-TC load balance), but never shrink the tile
    # by more than 2x to get it.
    if steps(bt) > 1 and steps(bt) % 2 != 0:
        for cand in range(bt - 1, max(bt // 2, 1) - 1, -1):
            if steps(cand) % 2 == 0:
                bt = cand
                break
    return bt


def channel_attention(x_nchw, w1, w2, *, target_tile_bytes=None,
                      vmem_limit_bytes=None):
    """x_nchw: (N, C, H, W) f32; w1: (C//16, C); w2: (C, C//16)."""
    N, C, H, W = x_nchw.shape
    hidden = C // 16
    HW = H * W

    # Generation-aware VMEM budgeting (v5e/v6e: 128 MiB physical, v7x: 64 MiB).
    try:
        vmem_capacity = int(pltpu.get_tpu_info().vmem_capacity_bytes)
    except Exception:
        vmem_capacity = 64 << 20                         # conservative (v7x)
    if vmem_limit_bytes is None:
        vmem_limit_bytes = int(0.7 * vmem_capacity)
    if target_tile_bytes is None:
        # 2x double-buffered input + 2x output tiles + weights + headroom.
        target_tile_bytes = max(1 << 20, vmem_limit_bytes // 6)

    # Contiguous reshape: pure metadata, no extra HBM pass.
    x = x_nchw.reshape(N, C, HW)

    # Pre-transpose the bias-free 1x1-conv weights once (tiny) so the kernel
    # runs plain row-major (rows, C) @ (C, hidden) matmuls.
    w1t = jnp.transpose(w1)                              # (C, C//16)
    w2t = jnp.transpose(w2)                              # (C//16, C)

    Bt = _choose_block_batch(N, C, HW, target_tile_bytes=target_tile_bytes)
    grid = (pl.cdiv(N, Bt),)
    # TODO(synk): for very large C*H*W where a single (C, HW) slab cannot fit
    # VMEM (threshold is ~2x lower on v7x's 64 MiB), restructure into two
    # spatial passes (accumulate sum/max over HW chunks, then a scale pass).

    weight_bytes = (w1t.size + w2t.size) * 4
    cost = pl.CostEstimate(
        flops=int(3 * N * C * HW + 8 * N * C * hidden),
        transcendentals=int(N * C),
        bytes_accessed=int(2 * N * C * HW * 4 + weight_bytes),
    )

    kernel = functools.partial(_channel_attention_kernel, inv_hw=1.0 / float(HW))

    out = pl.pallas_call(
        kernel,
        out_shape=jax.ShapeDtypeStruct((N, C, HW), jnp.float32),
        grid_spec=pltpu.PrefetchScalarGridSpec(
            num_scalar_prefetch=0,
            grid=grid,
            in_specs=[
                # Last two block dims equal the full array dims -> no pad/slice
                # round-trips; the tail vreg store is just a masked vst.
                pl.BlockSpec((Bt, C, HW), lambda n: (n, 0, 0)),
                pl.BlockSpec((C, hidden), lambda n: (0, 0)),
                pl.BlockSpec((hidden, C), lambda n: (0, 0)),
            ],
            out_specs=pl.BlockSpec((Bt, C, HW), lambda n: (n, 0, 0)),
        ),
        compiler_params=pltpu.CompilerParams(
            dimension_semantics=("parallel",),
            vmem_limit_bytes=int(vmem_limit_bytes),
        ),
        cost_estimate=cost,
    )(x, w1t, w2t)

    return out.reshape(N, C, H, W)


def channel_attention_ref(x_nchw, w1, w2):
    # Pure-JAX reference matching the PyTorch forward.
    avg = jnp.mean(x_nchw, axis=(2, 3))                  # (N, C)
    mx = jnp.max(x_nchw, axis=(2, 3))                    # (N, C)

    def fc(p):                                           # p: (N, C)
        h = jnp.maximum(p @ w1.T, 0.0)                   # (N, C//16)
        return h @ w2.T                                  # (N, C)

    y = jax.nn.sigmoid(fc(avg) + fc(mx))                 # (N, C)
    return x_nchw * y[:, :, None, None]


if __name__ == "__main__":
    key = jax.random.PRNGKey(0)
    # C must be >= 16 (C//16 hidden dim). H*W = 240 (not a multiple of 128) to
    # exercise the no-pad / masked-store path.
    N, C, H, W = 2, 64, 16, 15

    kx, k1, k2 = jax.random.split(key, 3)
    x = jax.random.normal(kx, (N, C, H, W), dtype=jnp.float32)
    # Deterministic synthetic weights for the two bias-free 1x1 convs.
    w1 = jax.random.normal(k1, (C // 16, C), dtype=jnp.float32) * (1.0 / jnp.sqrt(C))
    w2 = jax.random.normal(k2, (C, C // 16), dtype=jnp.float32) * (1.0 / jnp.sqrt(C // 16))

    out = jax.block_until_ready(channel_attention(x, w1, w2))

    ref = channel_attention_ref(x, w1, w2)
    assert jnp.allclose(out, ref, atol=1e-5, rtol=1e-5), "mismatch vs reference"

    print("KERNEL_OK")
</pallas_src>

<mosaic_0001>
module attributes {stable_mosaic.version = 11 : i64} {
  func.func @_channel_attention_kernel(%arg0: i32, %arg1: memref<1x64x240xf32, #tpu.memory_space<vmem>>, %arg2: memref<64x4xf32, #tpu.memory_space<vmem>>, %arg3: memref<4x64xf32, #tpu.memory_space<vmem>>, %arg4: memref<1x64x240xf32, #tpu.memory_space<vmem>>) attributes {dimension_semantics = [#tpu.dimension_semantics<parallel>], iteration_bounds = array<i64: 2>, scalar_prefetch = 0 : i64, scratch_operands = 0 : i64, tpu.core_type = #tpu.core_type<tc>, window_params = [{transform_indices = @transform_0, window_bounds = array<i64: 1, 64, 240>}, {pipeline_mode = #tpu.pipeline_mode<synchronous>, transform_indices = @transform_1, window_bounds = array<i64: 64, 4>}, {pipeline_mode = #tpu.pipeline_mode<synchronous>, transform_indices = @transform_2, window_bounds = array<i64: 4, 64>}, {transform_indices = @transform_3, window_bounds = array<i64: 1, 64, 240>}]} {
    %c0 = arith.constant 0 : index
    %c0_0 = arith.constant 0 : index
    %c0_1 = arith.constant 0 : index
    %0 = vector.load %arg1[%c0, %c0_0, %c0_1] : memref<1x64x240xf32, #tpu.memory_space<vmem>>, vector<1x64x240xf32>
    %c0_2 = arith.constant 0 : index
    %c0_3 = arith.constant 0 : index
    %1 = vector.load %arg2[%c0_2, %c0_3] : memref<64x4xf32, #tpu.memory_space<vmem>>, vector<64x4xf32>
    %c0_4 = arith.constant 0 : index
    %c0_5 = arith.constant 0 : index
    %2 = vector.load %arg3[%c0_4, %c0_5] : memref<4x64xf32, #tpu.memory_space<vmem>>, vector<4x64xf32>
    %cst = arith.constant dense<0.000000e+00> : vector<1x64xf32>
    %3 = vector.multi_reduction <add>, %0, %cst [2] : vector<1x64x240xf32> to vector<1x64xf32>
    %cst_6 = arith.constant 0.00416666688 : f32
    %4 = vector.broadcast %cst_6 : f32 to vector<1x64xf32>
    %5 = arith.mulf %3, %4 : vector<1x64xf32>
    %cst_7 = arith.constant dense<0xFF800000> : vector<1x64xf32>
    %6 = vector.multi_reduction <maximumf>, %0, %cst_7 [2] : vector<1x64x240xf32> to vector<1x64xf32>
    %cst_8 = arith.constant dense<0.000000e+00> : vector<1x4xf32>
    %7 = tpu.matmul %5, %1, %cst_8 {dimension_numbers = #tpu.dot_dimension_numbers<[1], [0], [0], [1], [0, 0, 1, 1], [], []>} : vector<1x64xf32>, vector<64x4xf32>, vector<1x4xf32> -> vector<1x4xf32>
    %cst_9 = arith.constant 0.000000e+00 : f32
    %8 = vector.broadcast %cst_9 : f32 to vector<1x4xf32>
    %9 = arith.maximumf %7, %8 : vector<1x4xf32>
    %cst_10 = arith.constant dense<0.000000e+00> : vector<1x64xf32>
    %10 = tpu.matmul %9, %2, %cst_10 {dimension_numbers = #tpu.dot_dimension_numbers<[1], [0], [0], [1], [0, 0, 1, 1], [], []>} : vector<1x4xf32>, vector<4x64xf32>, vector<1x64xf32> -> vector<1x64xf32>
    %cst_11 = arith.constant dense<0.000000e+00> : vector<1x4xf32>
    %11 = tpu.matmul %6, %1, %cst_11 {dimension_numbers = #tpu.dot_dimension_numbers<[1], [0], [0], [1], [0, 0, 1, 1], [], []>} : vector<1x64xf32>, vector<64x4xf32>, vector<1x4xf32> -> vector<1x4xf32>
    %cst_12 = arith.constant 0.000000e+00 : f32
    %12 = vector.broadcast %cst_12 : f32 to vector<1x4xf32>
    %13 = arith.maximumf %11, %12 : vector<1x4xf32>
    %cst_13 = arith.constant dense<0.000000e+00> : vector<1x64xf32>
    %14 = tpu.matmul %13, %2, %cst_13 {dimension_numbers = #tpu.dot_dimension_numbers<[1], [0], [0], [1], [0, 0, 1, 1], [], []>} : vector<1x4xf32>, vector<4x64xf32>, vector<1x64xf32> -> vector<1x64xf32>
    %15 = arith.addf %10, %14 : vector<1x64xf32>
    %16 = arith.negf %15 : vector<1x64xf32>
    %17 = math.exp %16 : vector<1x64xf32>
    %cst_14 = arith.constant 1.000000e+00 : f32
    %18 = vector.broadcast %cst_14 : f32 to vector<1x64xf32>
    %19 = arith.addf %18, %17 : vector<1x64xf32>
    %20 = arith.divf %18, %19 : vector<1x64xf32>
    %21 = vector.shape_cast %20 : vector<1x64xf32> to vector<1x64x1xf32>
    %22 = vector.broadcast %21 : vector<1x64x1xf32> to vector<1x64x240xf32>
    %23 = arith.mulf %0, %22 : vector<1x64x240xf32>
    %c0_15 = arith.constant 0 : index
    %c0_16 = arith.constant 0 : index
    %c0_17 = arith.constant 0 : index
    %24 = vector.load %arg4[%c0_15, %c0_16, %c0_17] : memref<1x64x240xf32, #tpu.memory_space<vmem>>, vector<1x64x240xf32>
    tpu.vector_store %arg4[%c0_15, %c0_16, %c0_17], %23 {strides = array<i32>} : memref<1x64x240xf32, #tpu.memory_space<vmem>>, vector<1x64x240xf32>,
    return
  }
  func.func @transform_0(%arg0: i32) -> (i32, i32, i32) {
    %c0_i32 = arith.constant 0 : i32
    %c0_i32_0 = arith.constant 0 : i32
    %c0_i32_1 = arith.constant 0 : i32
    return %arg0, %c0_i32, %c0_i32_0 : i32, i32, i32
  }
  func.func @transform_1(%arg0: i32) -> (i32, i32) {
    %c0_i32 = arith.constant 0 : i32
    %c0_i32_0 = arith.constant 0 : i32
    %c0_i32_1 = arith.constant 0 : i32
    return %c0_i32, %c0_i32_0 : i32, i32
  }
  func.func @transform_2(%arg0: i32) -> (i32, i32) {
    %c0_i32 = arith.constant 0 : i32
    %c0_i32_0 = arith.constant 0 : i32
    %c0_i32_1 = arith.constant 0 : i32
    return %c0_i32, %c0_i32_0 : i32, i32
  }
  func.func @transform_3(%arg0: i32) -> (i32, i32, i32) {
    %c0_i32 = arith.constant 0 : i32
    %c0_i32_0 = arith.constant 0 : i32
    %c0_i32_1 = arith.constant 0 : i32
    return %arg0, %c0_i32, %c0_i32_0 : i32, i32, i32
  }
}

</mosaic_0001>

<llo_original>
// kernel: tpu_custom_call.1
$region0: #{tpu_custom_call.1}
  #allocation0 [shape = 'u32[]', space=smem, size = 0x4, offset = 0x4, fixed_abs, tag = 'smem constant byte address 0x4 - core index']
  #allocation1 [shape = 'u32[144,128]{1,0:T(1,128)}', space=vmem, size = 0x12000, scoped, tag = 'internal scratch']
  %s0 = inlined_call_operand.hbm [shape: f32[2,64,240], index: 0, kind: input, shape index: {}]
  %s1 = inlined_call_operand.vmem [shape: f32[64,4], index: 1, kind: input, shape index: {}]
  %s2 = inlined_call_operand.vmem [shape: f32[4,64], index: 2, kind: input, shape index: {}]
  %s3 = inlined_call_operand.hbm [shape: f32[2,64,240], index: 3, kind: output, shape index: {}]
  %s4 = sld [smem:[#allocation0]]
  $region49: #{tpu_custom_call.1} parent=0
    _
  %s6 = ssub.s32 1, %s4
  %s7 = scalar_select 0, %s6, %s4
  $region1: #{tpu_custom_call.1} parent=0
    #allocation2 [shape = 'u8[131072]{0}', space=vmem, size = 0x20000, scoped, tag = 'input window, operand 0']
    #allocation3 [shape = 's32[2]{0}', space=sflag, size = 0x8, scoped, tag = 'scoped memory for tpu_custom_call.1']
    #allocation4 [shape = 's32[2]{0}', space=sflag, size = 0x8, scoped, tag = 'scoped memory for tpu_custom_call.1']
    #allocation5 [shape = 'u8[131072]{0}', space=vmem, size = 0x20000, scoped, tag = 'output window, operand 0']
    %8 = vsyncpa [#allocation3], 0
    %s9 = scalar_lea.sflag [#allocation3], 1
    %10 = vsyncpa %s9, 0
    %11 = vsyncpa [#allocation4], 0
    %s12 = scalar_lea.sflag [#allocation4], 1
    %13 = vsyncpa %s12, 0
    loop: start=0, step=1, limit=4
    $region2: #{tpu_custom_call.1} parent=1 // loop_pre_header
      _
    $region3: #{tpu_custom_call.1} parent=1 // loop_header
      %s15 = sphi 0, %s19
      %p16 = scmp.ge.s32.totalorder %s15, 4
      %s25 = sphi 0, %s27
      %s28 = sphi 0, %s25
      %s29 = sphi 0, %s28
      %s45 = sphi 0, %s29
      %s49 = sphi 0, %s49
      %s51 = sphi 0, %s49
      %s52 = sphi 0, %s51
      %s66 = sphi 0, %s52
      %s70 = sphi 0, %s70
      %s72 = sphi 0, %s70
      %s73 = sphi 0, %s72
      %s87 = sphi 0, %s73
      %s93 = sphi 0, %s95
      %s96 = sphi 0, %s93
      %s97 = sphi 0, %s96
      %s113 = sphi 0, %s97
    $region4: #{tpu_custom_call.1} parent=1 // loop_header_branch
      %18 = sbr.rel (%p16) target = $region8
    $region5: #{tpu_custom_call.1} parent=1 // loop_body
      %s20 = ssub.s32 %s15, 1
      %s21 = ssub.s32 %s15, 2
      %s22 = sadd.s32 %s15, 1
      %s23 = ssub.s32 %s15, %s22
      %p24 = scmp.eq.s32.totalorder %s23, 0
      %s26 = sadd.s32 %s25, 1
      %s27 = scalar_select %p24, %s25, %s26
      %p30 = pneg %p24
      %p31 = scmp.eq.s32.totalorder %s15, 1
      %p32 = por %p30, %p31
      %p33 = scmp.ne.s32.totalorder %s25, %s28
      %p34 = scmp.eq.s32.totalorder %s15, 0
      %p35 = por %p33, %p34
      %p36 = scmp.ne.s32.totalorder %s25, %s28
      %p37 = scmp.eq.s32.totalorder %s20, 1
      %p38 = por %p36, %p37
      %p39 = scmp.ne.s32.totalorder %s28, %s29
      %p40 = scmp.eq.s32.totalorder %s20, 0
      %p41 = por %p39, %p40
      %p42 = scmp.ne.s32.totalorder %s28, %s29
      %p43 = scmp.eq.s32.totalorder %s21, 1
      %p44 = por %p42, %p43
      %p46 = scmp.ne.s32.totalorder %s29, %s45
      %p47 = scmp.eq.s32.totalorder %s21, 0
      %p48 = por %p46, %p47
      %s50 = sadd.s32 %s49, 1
      %p53 = scmp.eq.s32.totalorder %s15, 1
      %p54 = scmp.ne.s32.totalorder %s49, %s51
      %p55 = scmp.eq.s32.totalorder %s15, 0
      %p56 = por %p54, %p55
      %p57 = scmp.ne.s32.totalorder %s49, %s51
      %p58 = scmp.eq.s32.totalorder %s20, 1
      %p59 = por %p57, %p58
      %p60 = scmp.ne.s32.totalorder %s51, %s52
      %p61 = scmp.eq.s32.totalorder %s20, 0
      %p62 = por %p60, %p61
      %p63 = scmp.ne.s32.totalorder %s51, %s52
      %p64 = scmp.eq.s32.totalorder %s21, 1
      %p65 = por %p63, %p64
      %p67 = scmp.ne.s32.totalorder %s52, %s66
      %p68 = scmp.eq.s32.totalorder %s21, 0
      %p69 = por %p67, %p68
      %s71 = sadd.s32 %s70, 1
      %p74 = scmp.eq.s32.totalorder %s15, 1
      %p75 = scmp.ne.s32.totalorder %s70, %s72
      %p76 = scmp.eq.s32.totalorder %s15, 0
      %p77 = por %p75, %p76
      %p78 = scmp.ne.s32.totalorder %s70, %s72
      %p79 = scmp.eq.s32.totalorder %s20, 1
      %p80 = por %p78, %p79
      %p81 = scmp.ne.s32.totalorder %s72, %s73
      %p82 = scmp.eq.s32.totalorder %s20, 0
      %p83 = por %p81, %p82
      %p84 = scmp.ne.s32.totalorder %s72, %s73
      %p85 = scmp.eq.s32.totalorder %s21, 1
      %p86 = por %p84, %p85
      %p88 = scmp.ne.s32.totalorder %s73, %s87
      %p89 = scmp.eq.s32.totalorder %s21, 0
      %p90 = por %p88, %p89
      %s91 = ssub.s32 %s15, %s22
      %p92 = scmp.eq.s32.totalorder %s91, 0
      %s94 = sadd.s32 %s93, 1
      %s95 = scalar_select %p92, %s93, %s94
      %p98 = pneg %p92
      %p99 = scmp.eq.s32.totalorder %s15, 1
      %p100 = por %p98, %p99
      %p101 = scmp.ne.s32.totalorder %s93, %s96
      %p102 = scmp.eq.s32.totalorder %s15, 0
      %p103 = por %p101, %p102
      %p104 = scmp.ne.s32.totalorder %s93, %s96
      %p105 = scmp.eq.s32.totalorder %s20, 1
      %p106 = por %p104, %p105
      %p107 = scmp.ne.s32.totalorder %s96, %s97
      %p108 = scmp.eq.s32.totalorder %s20, 0
      %p109 = por %p107, %p108
      %p110 = scmp.ne.s32.totalorder %s96, %s97
      %p111 = scmp.eq.s32.totalorder %s21, 1
      %p112 = por %p110, %p111
      %p114 = scmp.ne.s32.totalorder %s97, %s113
      %p115 = scmp.eq.s32.totalorder %s21, 0
      %p116 = por %p114, %p115
      %p117 = scmp.le.s32.totalorder 1, %s15
      %p118 = scmp.lt.s32.totalorder %s15, 3
      %p119 = pnand %p117, %p118
      %p120 = pneg %p119
      // Predicated region
      $region9: #{tpu_custom_call.1} parent=5 // pred_check
        _
      $region10: #{tpu_custom_call.1} parent=5 // pred_check_branch
        %122 = sbr.rel (%p119) target = $region12
      $region11: #{tpu_custom_call.1} parent=5 // pred_region
        %s123 = ssub.s32 %s15, 1
        // Predicated region
        $region13: #{tpu_custom_call.1} parent=11 // pred_check
          %p124 = pneg %p62
        $region14: #{tpu_custom_call.1} parent=11 // pred_check_branch
          %126 = sbr.rel (%p124) target = $region16
        $region15: #{tpu_custom_call.1} parent=11 // pred_region
          _
        $region16: #{tpu_custom_call.1} parent=11 // pred_fallthru
          _
        // Predicated region
        $region17: #{tpu_custom_call.1} parent=11 // pred_check
          %p127 = pneg %p83
        $region18: #{tpu_custom_call.1} parent=11 // pred_check_branch
          %129 = sbr.rel (%p127) target = $region20
        $region19: #{tpu_custom_call.1} parent=11 // pred_region
          _
        $region20: #{tpu_custom_call.1} parent=11 // pred_fallthru
          _
      $region12: #{tpu_custom_call.1} parent=5 // pred_fallthru
        _
      %p130 = scmp.lt.s32.totalorder %s15, 2
      // Predicated region
      $region21: #{tpu_custom_call.1} parent=5 // pred_check
        %p131 = pneg %p130
      $region22: #{tpu_custom_call.1} parent=5 // pred_check_branch
        %133 = sbr.rel (%p131) target = $region24
      $region23: #{tpu_custom_call.1} parent=5 // pred_region
        // Predicated region
        $region25: #{tpu_custom_call.1} parent=23 // pred_check
          %p134 = pneg %p35
        $region26: #{tpu_custom_call.1} parent=23 // pred_check_branch
          %136 = sbr.rel (%p134) target = $region28
        $region27: #{tpu_custom_call.1} parent=23 // pred_region
          %s137 = sand.u32 %s25, 1
          %s138 = scalar_lea.sflag [#allocation3], %s137
          %s139 = sand.u32 %s25, 1
          %s140 = smul.addr %s139, 128
          %s141 = scalar_lea.vmem [#allocation2], %s140
          %s143 = ssub.s32 2048, 2048
          %144 = vsyncadd %s138, %s143
          %s145 = smul.addr %s15, 16
          %s146 = smul.addr %s145, 128
          %s147 = scalar_lea.hbm %s0, %s146
          %s148 = sshll.u32 %s141, 4
          %s149 = int_to_ptr.vmem [resolvable:$true] %s148
          %154 = dma.hbm_to_vmem [thread:$0]  %s147, 2048, %s149, %s138, 256, 256, 16
        $region28: #{tpu_custom_call.1} parent=23 // pred_fallthru
          _
      $region24: #{tpu_custom_call.1} parent=5 // pred_fallthru
        _
      %p155 = scmp.le.s32.totalorder 1, %s15
      %p156 = scmp.lt.s32.totalorder %s15, 3
      %p157 = pnand %p155, %p156
      %p158 = pneg %p157
      // Predicated region
      $region29: #{tpu_custom_call.1} parent=5 // pred_check
        _
      $region30: #{tpu_custom_call.1} parent=5 // pred_check_branch
        %160 = sbr.rel (%p157) target = $region32
      $region31: #{tpu_custom_call.1} parent=5 // pred_region
        %s161 = ssub.s32 %s15, 1
        %s162 = sand.u32 %s28, 1
        %s163 = scalar_lea.sflag [#allocation3], %s162
        %s164 = sand.u32 %s28, 1
        %s165 = smul.addr %s164, 128
        %s166 = scalar_lea.vmem [#allocation2], %s165
        // Predicated region
        $region33: #{tpu_custom_call.1} parent=31 // pred_check
          %p167 = pneg %p41
        $region34: #{tpu_custom_call.1} parent=31 // pred_check_branch
          %169 = sbr.rel (%p167) target = $region36
        $region35: #{tpu_custom_call.1} parent=31 // pred_region
          %170 = dma.done %s163, 2048
        $region36: #{tpu_custom_call.1} parent=31 // pred_fallthru
          _
        %s171 = sand.u32 %s28, 1
        %s172 = scalar_lea.sflag [#allocation3], %s171
        %s173 = sand.u32 %s28, 1
        %s174 = smul.addr %s173, 128
        %s175 = scalar_lea.vmem [#allocation2], %s174
        %p176 = pneg %p41
        %p177 = pneg %p38
        %p178 = pneg %p62
        %p179 = pneg %p59
        %p180 = pneg %p83
        %p181 = pneg %p80
        %p182 = pneg %p109
        %p183 = pneg %p106
        %s184 = sand.u32 %s96, 1
        %s185 = scalar_lea.sflag [#allocation4], %s184
        %s186 = sand.u32 %s96, 1
        %s187 = smul.addr %s186, 128
        %s188 = scalar_lea.vmem [#allocation5], %s187
        %v189 = vld [vmem:[%s166] sm:$0xff]
        %v190 = vld [vmem:[%s166 + $0x8] sm:$0xff]
        %v191 = vld [vmem:[%s166 + $0x10] sm:$0xff]
        %v192 = vld [vmem:[%s166 + $0x18] sm:$0xff]
        %v193 = vld [vmem:[%s166 + $0x20] sm:$0xff]
        %v194 = vld [vmem:[%s166 + $0x28] sm:$0xff]
        %v195 = vld [vmem:[%s166 + $0x30] sm:$0xff]
        %v196 = vld [vmem:[%s166 + $0x38] sm:$0xff]
        %v197 = vld [vmem:[%s166 + $0x40] sm:$0xff]
        %v198 = vld [vmem:[%s166 + $0x48] sm:$0xff]
        %v199 = vld [vmem:[%s166 + $0x50] sm:$0xff]
        %v200 = vld [vmem:[%s166 + $0x58] sm:$0xff]
        %v201 = vld [vmem:[%s166 + $0x60] sm:$0xff]
        %v202 = vld [vmem:[%s166 + $0x68] sm:$0xff]
        %v203 = vld [vmem:[%s166 + $0x70] sm:$0xff]
        %v204 = vld [vmem:[%s166 + $0x78] sm:$0xff]
        %v205 = vld [vmem:[%s1] sm:$0xff]
        %v206 = vld [vmem:[%s1 + $0x8] sm:$0xff]
        %v207 = vld [vmem:[%s1 + $0x10] sm:$0xff]
        %v208 = vld [vmem:[%s1 + $0x18] sm:$0xff]
        %v209 = vld [vmem:[%s1 + $0x20] sm:$0xff]
        %v210 = vld [vmem:[%s1 + $0x28] sm:$0xff]
        %v211 = vld [vmem:[%s1 + $0x30] sm:$0xff]
        %v212 = vld [vmem:[%s1 + $0x38] sm:$0xff]
        %v213 = vld [vmem:[%s2] sm:$0xf]
        %vm214 = vcmask 916480
        %v215 = vsel %vm214, %v190, 0.0
        %v216 = vadd.f32 %v189, %v215
        %217 = vadd.xlane.f32.xlu0 %v216
        %v218 = vpop.xlane.xlu0 %217
        %v219 = vsel %vm214, %v192, 0.0
        %v220 = vadd.f32 %v191, %v219
        %221 = vadd.xlane.f32.xlu0 %v220
        %v222 = vpop.xlane.xlu0 %221
        %v223 = vsel %vm214, %v194, 0.0
        %v224 = vadd.f32 %v193, %v223
        %225 = vadd.xlane.f32.xlu0 %v224
        %v226 = vpop.xlane.xlu0 %225
        %v227 = vsel %vm214, %v196, 0.0
        %v228 = vadd.f32 %v195, %v227
        %229 = vadd.xlane.f32.xlu0 %v228
        %v230 = vpop.xlane.xlu0 %229
        %v231 = vsel %vm214, %v198, 0.0
        %v232 = vadd.f32 %v197, %v231
        %233 = vadd.xlane.f32.xlu0 %v232
        %v234 = vpop.xlane.xlu0 %233
        %v235 = vsel %vm214, %v200, 0.0
        %v236 = vadd.f32 %v199, %v235
        %237 = vadd.xlane.f32.xlu0 %v236
        %v238 = vpop.xlane.xlu0 %237
        %v239 = vsel %vm214, %v202, 0.0
        %v240 = vadd.f32 %v201, %v239
        %241 = vadd.xlane.f32.xlu0 %v240
        %v242 = vpop.xlane.xlu0 %241
        %v243 = vsel %vm214, %v204, 0.0
        %v244 = vadd.f32 %v203, %v243
        %245 = vadd.xlane.f32.xlu0 %v244
        %v246 = vpop.xlane.xlu0 %245
        %v247 = vmul.f32 %v218, 0.004166667
        %v248 = vmul.f32 %v222, 0.004166667
        %v249 = vmul.f32 %v226, 0.004166667
        %v250 = vmul.f32 %v230, 0.004166667
        %v251 = vmul.f32 %v234, 0.004166667
        %v252 = vmul.f32 %v238, 0.004166667
        %v253 = vmul.f32 %v242, 0.004166667
        %v254 = vmul.f32 %v246, 0.004166667
        %v255 = vsel %vm214, %v190, -inf
        %v256 = vmax.f32 %v189, %v255
        %257 = vmax.xlane.f32.xlu0 %v256
        %v258 = vpop.xlane.xlu0 %257
        %v259 = vsel %vm214, %v192, -inf
        %v260 = vmax.f32 %v191, %v259
        %261 = vmax.xlane.f32.xlu0 %v260
        %v262 = vpop.xlane.xlu0 %261
        %v263 = vsel %vm214, %v194, -inf
        %v264 = vmax.f32 %v193, %v263
        %265 = vmax.xlane.f32.xlu0 %v264
        %v266 = vpop.xlane.xlu0 %265
        %v267 = vsel %vm214, %v196, -inf
        %v268 = vmax.f32 %v195, %v267
        %269 = vmax.xlane.f32.xlu0 %v268
        %v270 = vpop.xlane.xlu0 %269
        %v271 = vsel %vm214, %v198, -inf
        %v272 = vmax.f32 %v197, %v271
        %273 = vmax.xlane.f32.xlu0 %v272
        %v274 = vpop.xlane.xlu0 %273
        %v275 = vsel %vm214, %v200, -inf
        %v276 = vmax.f32 %v199, %v275
        %277 = vmax.xlane.f32.xlu0 %v276
        %v278 = vpop.xlane.xlu0 %277
        %v279 = vsel %vm214, %v202, -inf
        %v280 = vmax.f32 %v201, %v279
        %281 = vmax.xlane.f32.xlu0 %v280
        %v282 = vpop.xlane.xlu0 %281
        %v283 = vsel %vm214, %v204, -inf
        %v284 = vmax.f32 %v203, %v283
        %285 = vmax.xlane.f32.xlu0 %v284
        %v286 = vpop.xlane.xlu0 %285
        %v295 = vlaneseq
        %v296 = vand.u32 %v295, 127
        %v297 = vlaneseq
        %v298 = vshrl.u32 %v297, 7
        %v299 = vsub.s32 %v296, %v298
        %v300 = vrot.slane %v247, %v299
        %v301 = vadd.s32 %v296, 4294967288
        %v302 = vlaneseq
        %v303 = vshrl.u32 %v302, 7
        %v304 = vsub.s32 %v301, %v303
        %v305 = vrot.slane %v248, %v304
        %vm306 = vcmask 130112
        %v307 = vsel %vm306, %v305, %v300
        %v308 = vadd.s32 %v296, 4294967280
        %v309 = vlaneseq
        %v310 = vshrl.u32 %v309, 7
        %v311 = vsub.s32 %v308, %v310
        %v312 = vrot.slane %v249, %v311
        %vm313 = vcmask 195712
        %v314 = vsel %vm313, %v312, %v307
        %v315 = vadd.s32 %v296, 4294967272
        %v316 = vlaneseq
        %v317 = vshrl.u32 %v316, 7
        %v318 = vsub.s32 %v315, %v317
        %v319 = vrot.slane %v250, %v318
        %vm320 = vcmask 261312
        %v321 = vsel %vm320, %v319, %v314
        %v322 = vadd.s32 %v296, 4294967264
        %v323 = vlaneseq
        %v324 = vshrl.u32 %v323, 7
        %v325 = vsub.s32 %v322, %v324
        %v326 = vrot.slane %v251, %v325
        %vm327 = vcmask 326912
        %v328 = vsel %vm327, %v326, %v321
        %v329 = vadd.s32 %v296, 4294967256
        %v330 = vlaneseq
        %v331 = vshrl.u32 %v330, 7
        %v332 = vsub.s32 %v329, %v331
        %v333 = vrot.slane %v252, %v332
        %vm334 = vcmask 392512
        %v335 = vsel %vm334, %v333, %v328
        %v336 = vadd.s32 %v296, 4294967248
        %v337 = vlaneseq
        %v338 = vshrl.u32 %v337, 7
        %v339 = vsub.s32 %v336, %v338
        %v340 = vrot.slane %v253, %v339
        %vm341 = vcmask 458112
        %v342 = vsel %vm341, %v340, %v335
        %v343 = vadd.s32 %v296, 4294967240
        %v344 = vlaneseq
        %v345 = vshrl.u32 %v344, 7
        %v346 = vsub.s32 %v343, %v345
        %v347 = vrot.slane %v254, %v346
        %vm348 = vcmask 523712
        %v349 = vsel %vm348, %v347, %v342
        %vm350 = vcmask 523264
        %v351 = vsel %vm350, %v349, 0
        %353 = vmatprep.subr.mxu0 0.0
        %354 = vmatpush1.msra.mxu0 %v205
        %355 = vmatprep.subr.mxu0 0.0
        %356 = vmatpush1.msra.mxu0 %v206
        %357 = vmatprep.subr.mxu0 0.0
        %358 = vmatpush1.msra.mxu0 %v207
        %359 = vmatprep.subr.mxu0 0.0
        %360 = vmatpush1.msra.mxu0 %v208
        %361 = vmatprep.subr.mxu0 0.0
        %362 = vmatpush1.msra.mxu0 %v209
        %363 = vmatprep.subr.mxu0 0.0
        %364 = vmatpush1.msra.mxu0 %v210
        %365 = vmatprep.subr.mxu0 0.0
        %366 = vmatpush1.msra.mxu0 %v211
        %367 = vmatprep.subr.mxu0 0.0
        %368 = vmatpush1.msra.mxu0 %v212
        %369 = vmatprep.subr.mxu0 0.0
        %370 = vmatpush1.msra.mxu0 0.0
        %371 = vmatprep.subr.mxu0 0.0
        %372 = vmatpush1.msra.mxu0 0.0
        %373 = vmatprep.subr.mxu0 0.0
        %374 = vmatpush1.msra.mxu0 0.0
        %375 = vmatprep.subr.mxu0 0.0
        %376 = vmatpush1.msra.mxu0 0.0
        %377 = vmatprep.subr.mxu0 0.0
        %378 = vmatpush1.msra.mxu0 0.0
        %379 = vmatprep.subr.mxu0 0.0
        %380 = vmatpush1.msra.mxu0 0.0
        %381 = vmatprep.subr.mxu0 0.0
        %382 = vmatpush1.msra.mxu0 0.0
        %383 = vmatprep.subr.mxu0 0.0
        %384 = vmatpush1.msra.mxu0 0.0
        %385 = vmatprep.subr.mxu0 0.0
        %386 = vmatpush1.msra.mxu0 0.0
        %387 = vmatprep.subr.mxu0 0.0
        %388 = vmatpush1.msra.mxu0 0.0
        %389 = vmatprep.subr.mxu0 0.0
        %390 = vmatpush1.msra.mxu0 0.0
        %391 = vmatprep.subr.mxu0 0.0
        %392 = vmatpush1.msra.mxu0 0.0
        %393 = vmatprep.subr.mxu0 0.0
        %394 = vmatpush1.msra.mxu0 0.0
        %395 = vmatprep.subr.mxu0 0.0
        %396 = vmatpush1.msra.mxu0 0.0
        %397 = vmatprep.subr.mxu0 0.0
        %398 = vmatpush1.msra.mxu0 0.0
        %399 = vmatprep.subr.mxu0 0.0
        %400 = vmatpush1.msra.mxu0 0.0
        %401 = vmatprep.subr.mxu0 0.0
        %402 = vmatpush1.msra.mxu0 0.0
        %403 = vmatprep.subr.mxu0 0.0
        %404 = vmatpush1.msra.mxu0 0.0
        %405 = vmatprep.subr.mxu0 0.0
        %406 = vmatpush1.msra.mxu0 0.0
        %407 = vmatprep.subr.mxu0 0.0
        %408 = vmatpush1.msra.mxu0 0.0
        %409 = vmatprep.subr.mxu0 0.0
        %410 = vmatpush1.msra.mxu0 0.0
        %411 = vmatprep.subr.mxu0 0.0
        %412 = vmatpush1.msra.mxu0 0.0
        %413 = vmatprep.subr.mxu0 0.0
        %414 = vmatpush1.msra.mxu0 0.0
        %415 = vmatprep.subr.mxu0 0.0
        %416 = vmatpush1.msra.mxu0 0.0
        %417 = vmatprep.mubr.f32.mxu0 0.0
        %418 = vmatmul.mubr.f32.gmra.mrb[0].mxu0 %v351
        %v419 = vpop.f32.mrb[0].mxu0
        %v420 = vadd.f32 0.0, %v419
        %v421 = vpop.f32.mrb[0].mxu0
        %422 = vdwg.mxu0
        %v423 = vmax.f32 %v420, 0.0
        %v432 = vlaneseq
        %v433 = vshrl.u32 %v432, 7
        %v434 = vsub.s32 %v296, %v433
        %v435 = vrot.slane %v258, %v434
        %v436 = vlaneseq
        %v437 = vshrl.u32 %v436, 7
        %v438 = vsub.s32 %v301, %v437
        %v439 = vrot.slane %v262, %v438
        %v440 = vsel %vm306, %v439, %v435
        %v441 = vlaneseq
        %v442 = vshrl.u32 %v441, 7
        %v443 = vsub.s32 %v308, %v442
        %v444 = vrot.slane %v266, %v443
        %v445 = vsel %vm313, %v444, %v440
        %v446 = vlaneseq
        %v447 = vshrl.u32 %v446, 7
        %v448 = vsub.s32 %v315, %v447
        %v449 = vrot.slane %v270, %v448
        %v450 = vsel %vm320, %v449, %v445
        %v451 = vlaneseq
        %v452 = vshrl.u32 %v451, 7
        %v453 = vsub.s32 %v322, %v452
        %v454 = vrot.slane %v274, %v453
        %v455 = vsel %vm327, %v454, %v450
        %v456 = vlaneseq
        %v457 = vshrl.u32 %v456, 7
        %v458 = vsub.s32 %v329, %v457
        %v459 = vrot.slane %v278, %v458
        %v460 = vsel %vm334, %v459, %v455
        %v461 = vlaneseq
        %v462 = vshrl.u32 %v461, 7
        %v463 = vsub.s32 %v336, %v462
        %v464 = vrot.slane %v282, %v463
        %v465 = vsel %vm341, %v464, %v460
        %v466 = vlaneseq
        %v467 = vshrl.u32 %v466, 7
        %v468 = vsub.s32 %v343, %v467
        %v469 = vrot.slane %v286, %v468
        %v470 = vsel %vm348, %v469, %v465
        %v471 = vsel %vm350, %v470, 0
        %473 = vmatprep.subr.mxu0 0.0
        %474 = vmatpush1.msra.mxu0 %v205
        %475 = vmatprep.subr.mxu0 0.0
        %476 = vmatpush1.msra.mxu0 %v206
        %477 = vmatprep.subr.mxu0 0.0
        %478 = vmatpush1.msra.mxu0 %v207
        %479 = vmatprep.subr.mxu0 0.0
        %480 = vmatpush1.msra.mxu0 %v208
        %481 = vmatprep.subr.mxu0 0.0
        %482 = vmatpush1.msra.mxu0 %v209
        %483 = vmatprep.subr.mxu0 0.0
        %484 = vmatpush1.msra.mxu0 %v210
        %485 = vmatprep.subr.mxu0 0.0
        %486 = vmatpush1.msra.mxu0 %v211
        %487 = vmatprep.subr.mxu0 0.0
        %488 = vmatpush1.msra.mxu0 %v212
        %489 = vmatprep.subr.mxu0 0.0
        %490 = vmatpush1.msra.mxu0 0.0
        %491 = vmatprep.subr.mxu0 0.0
        %492 = vmatpush1.msra.mxu0 0.0
        %493 = vmatprep.subr.mxu0 0.0
        %494 = vmatpush1.msra.mxu0 0.0
        %495 = vmatprep.subr.mxu0 0.0
        %496 = vmatpush1.msra.mxu0 0.0
        %497 = vmatprep.subr.mxu0 0.0
        %498 = vmatpush1.msra.mxu0 0.0
        %499 = vmatprep.subr.mxu0 0.0
        %500 = vmatpush1.msra.mxu0 0.0
        %501 = vmatprep.subr.mxu0 0.0
        %502 = vmatpush1.msra.mxu0 0.0
        %503 = vmatprep.subr.mxu0 0.0
        %504 = vmatpush1.msra.mxu0 0.0
        %505 = vmatprep.subr.mxu0 0.0
        %506 = vmatpush1.msra.mxu0 0.0
        %507 = vmatprep.subr.mxu0 0.0
        %508 = vmatpush1.msra.mxu0 0.0
        %509 = vmatprep.subr.mxu0 0.0
        %510 = vmatpush1.msra.mxu0 0.0
        %511 = vmatprep.subr.mxu0 0.0
        %512 = vmatpush1.msra.mxu0 0.0
        %513 = vmatprep.subr.mxu0 0.0
        %514 = vmatpush1.msra.mxu0 0.0
        %515 = vmatprep.subr.mxu0 0.0
        %516 = vmatpush1.msra.mxu0 0.0
        %517 = vmatprep.subr.mxu0 0.0
        %518 = vmatpush1.msra.mxu0 0.0
        %519 = vmatprep.subr.mxu0 0.0
        %520 = vmatpush1.msra.mxu0 0.0
        %521 = vmatprep.subr.mxu0 0.0
        %522 = vmatpush1.msra.mxu0 0.0
        %523 = vmatprep.subr.mxu0 0.0
        %524 = vmatpush1.msra.mxu0 0.0
        %525 = vmatprep.subr.mxu0 0.0
        %526 = vmatpush1.msra.mxu0 0.0
        %527 = vmatprep.subr.mxu0 0.0
        %528 = vmatpush1.msra.mxu0 0.0
        %529 = vmatprep.subr.mxu0 0.0
        %530 = vmatpush1.msra.mxu0 0.0
        %531 = vmatprep.subr.mxu0 0.0
        %532 = vmatpush1.msra.mxu0 0.0
        %533 = vmatprep.subr.mxu0 0.0
        %534 = vmatpush1.msra.mxu0 0.0
        %535 = vmatprep.subr.mxu0 0.0
        %536 = vmatpush1.msra.mxu0 0.0
        %537 = vmatprep.mubr.f32.mxu0 0.0
        %538 = vmatmul.mubr.f32.gmra.mrb[0].mxu0 %v471
        %v539 = vpop.f32.mrb[0].mxu0
        %v540 = vadd.f32 0.0, %v539
        %v541 = vpop.f32.mrb[0].mxu0
        %542 = vdwg.mxu0
        %v543 = vmax.f32 %v540, 0.0
        %vm544 = vcmask 31744
        %v546 = vsel %vm544, %v543, 0
        %vm548 = vcmask 1043456
        %v550 = vsel %vm548, %v213, 0
        %552 = vmatprep.subr.mxu0 0.0
        %553 = vmatpush1.msra.mxu0 %v550
        %554 = vmatprep.subr.mxu0 0.0
        %555 = vmatpush1.msra.mxu0 0.0
        %556 = vmatprep.subr.mxu0 0.0
        %557 = vmatpush1.msra.mxu0 0.0
        %558 = vmatprep.subr.mxu0 0.0
        %559 = vmatpush1.msra.mxu0 0.0
        %560 = vmatprep.subr.mxu0 0.0
        %561 = vmatpush1.msra.mxu0 0.0
        %562 = vmatprep.subr.mxu0 0.0
        %563 = vmatpush1.msra.mxu0 0.0
        %564 = vmatprep.subr.mxu0 0.0
        %565 = vmatpush1.msra.mxu0 0.0
        %566 = vmatprep.subr.mxu0 0.0
        %567 = vmatpush1.msra.mxu0 0.0
        %568 = vmatprep.subr.mxu0 0.0
        %569 = vmatpush1.msra.mxu0 0.0
        %570 = vmatprep.subr.mxu0 0.0
        %571 = vmatpush1.msra.mxu0 0.0
        %572 = vmatprep.subr.mxu0 0.0
        %573 = vmatpush1.msra.mxu0 0.0
        %574 = vmatprep.subr.mxu0 0.0
        %575 = vmatpush1.msra.mxu0 0.0
        %576 = vmatprep.subr.mxu0 0.0
        %577 = vmatpush1.msra.mxu0 0.0
        %578 = vmatprep.subr.mxu0 0.0
        %579 = vmatpush1.msra.mxu0 0.0
        %580 = vmatprep.subr.mxu0 0.0
        %581 = vmatpush1.msra.mxu0 0.0
        %582 = vmatprep.subr.mxu0 0.0
        %583 = vmatpush1.msra.mxu0 0.0
        %584 = vmatprep.subr.mxu0 0.0
        %585 = vmatpush1.msra.mxu0 0.0
        %586 = vmatprep.subr.mxu0 0.0
        %587 = vmatpush1.msra.mxu0 0.0
        %588 = vmatprep.subr.mxu0 0.0
        %589 = vmatpush1.msra.mxu0 0.0
        %590 = vmatprep.subr.mxu0 0.0
        %591 = vmatpush1.msra.mxu0 0.0
        %592 = vmatprep.subr.mxu0 0.0
        %593 = vmatpush1.msra.mxu0 0.0
        %594 = vmatprep.subr.mxu0 0.0
        %595 = vmatpush1.msra.mxu0 0.0
        %596 = vmatprep.subr.mxu0 0.0
        %597 = vmatpush1.msra.mxu0 0.0
        %598 = vmatprep.subr.mxu0 0.0
        %599 = vmatpush1.msra.mxu0 0.0
        %600 = vmatprep.subr.mxu0 0.0
        %601 = vmatpush1.msra.mxu0 0.0
        %602 = vmatprep.subr.mxu0 0.0
        %603 = vmatpush1.msra.mxu0 0.0
        %604 = vmatprep.subr.mxu0 0.0
        %605 = vmatpush1.msra.mxu0 0.0
        %606 = vmatprep.subr.mxu0 0.0
        %607 = vmatpush1.msra.mxu0 0.0
        %608 = vmatprep.subr.mxu0 0.0
        %609 = vmatpush1.msra.mxu0 0.0
        %610 = vmatprep.subr.mxu0 0.0
        %611 = vmatpush1.msra.mxu0 0.0
        %612 = vmatprep.subr.mxu0 0.0
        %613 = vmatpush1.msra.mxu0 0.0
        %614 = vmatprep.subr.mxu0 0.0
        %615 = vmatpush1.msra.mxu0 0.0
        %616 = vmatprep.mubr.f32.mxu0 0.0
        %617 = vmatmul.mubr.f32.gmra.mrb[0].mxu0 %v546
        %v618 = vpop.f32.mrb[0].mxu0
        %v619 = vadd.f32 0.0, %v618
        %v620 = vpop.f32.mrb[0].mxu0
        %621 = vdwg.mxu0
        %v623 = vsel %vm544, %v423, 0
        %625 = vmatprep.subr.mxu0 0.0
        %626 = vmatpush1.msra.mxu0 %v550
        %627 = vmatprep.subr.mxu0 0.0
        %628 = vmatpush1.msra.mxu0 0.0
        %629 = vmatprep.subr.mxu0 0.0
        %630 = vmatpush1.msra.mxu0 0.0
        %631 = vmatprep.subr.mxu0 0.0
        %632 = vmatpush1.msra.mxu0 0.0
        %633 = vmatprep.subr.mxu0 0.0
        %634 = vmatpush1.msra.mxu0 0.0
        %635 = vmatprep.subr.mxu0 0.0
        %636 = vmatpush1.msra.mxu0 0.0
        %637 = vmatprep.subr.mxu0 0.0
        %638 = vmatpush1.msra.mxu0 0.0
        %639 = vmatprep.subr.mxu0 0.0
        %640 = vmatpush1.msra.mxu0 0.0
        %641 = vmatprep.subr.mxu0 0.0
        %642 = vmatpush1.msra.mxu0 0.0
        %643 = vmatprep.subr.mxu0 0.0
        %644 = vmatpush1.msra.mxu0 0.0
        %645 = vmatprep.subr.mxu0 0.0
        %646 = vmatpush1.msra.mxu0 0.0
        %647 = vmatprep.subr.mxu0 0.0
        %648 = vmatpush1.msra.mxu0 0.0
        %649 = vmatprep.subr.mxu0 0.0
        %650 = vmatpush1.msra.mxu0 0.0
        %651 = vmatprep.subr.mxu0 0.0
        %652 = vmatpush1.msra.mxu0 0.0
        %653 = vmatprep.subr.mxu0 0.0
        %654 = vmatpush1.msra.mxu0 0.0
        %655 = vmatprep.subr.mxu0 0.0
        %656 = vmatpush1.msra.mxu0 0.0
        %657 = vmatprep.subr.mxu0 0.0
        %658 = vmatpush1.msra.mxu0 0.0
        %659 = vmatprep.subr.mxu0 0.0
        %660 = vmatpush1.msra.mxu0 0.0
        %661 = vmatprep.subr.mxu0 0.0
        %662 = vmatpush1.msra.mxu0 0.0
        %663 = vmatprep.subr.mxu0 0.0
        %664 = vmatpush1.msra.mxu0 0.0
        %665 = vmatprep.subr.mxu0 0.0
        %666 = vmatpush1.msra.mxu0 0.0
        %667 = vmatprep.subr.mxu0 0.0
        %668 = vmatpush1.msra.mxu0 0.0
        %669 = vmatprep.subr.mxu0 0.0
        %670 = vmatpush1.msra.mxu0 0.0
        %671 = vmatprep.subr.mxu0 0.0
        %672 = vmatpush1.msra.mxu0 0.0
        %673 = vmatprep.subr.mxu0 0.0
        %674 = vmatpush1.msra.mxu0 0.0
        %675 = vmatprep.subr.mxu0 0.0
        %676 = vmatpush1.msra.mxu0 0.0
        %677 = vmatprep.subr.mxu0 0.0
        %678 = vmatpush1.msra.mxu0 0.0
        %679 = vmatprep.subr.mxu0 0.0
        %680 = vmatpush1.msra.mxu0 0.0
        %681 = vmatprep.subr.mxu0 0.0
        %682 = vmatpush1.msra.mxu0 0.0
        %683 = vmatprep.subr.mxu0 0.0
        %684 = vmatpush1.msra.mxu0 0.0
        %685 = vmatprep.subr.mxu0 0.0
        %686 = vmatpush1.msra.mxu0 0.0
        %687 = vmatprep.subr.mxu0 0.0
        %688 = vmatpush1.msra.mxu0 0.0
        %689 = vmatprep.mubr.f32.mxu0 0.0
        %690 = vmatmul.mubr.f32.gmra.mrb[0].mxu0 %v623
        %v691 = vpop.f32.mrb[0].mxu0
        %v692 = vadd.f32 %v619, %v691
        %v693 = vpop.f32.mrb[0].mxu0
        %694 = vdwg.mxu0
        %v695 = vxor.u32 %v692, 2147483648
        %v696 = vmul.f32 %v695, 1.442695
        %v697 = vpow.pop %v696
        %v698 = vadd.f32 %v697, 1.0
        %v699 = vrcp.pop %v698
        %v700 = vmul.f32 1.0, %v699
        %v701 = vlaneseq
        %v702 = vshrl.u32 %v701, 7
        %v703 = vsub.s32 0, %v702
        %v704 = vrot.slane %v700, %v703
        %706 = vbcast.lane.b32.xlu0 %v704, 256
        %v707 = vpop.permute.xlu0 %706
        %s709 = sor.u32 256, 8
        %710 = vbcast.lane.b32.xlu0 %v704, %s709
        %v711 = vpop.permute.xlu0 %710
        %s713 = sor.u32 256, 16
        %714 = vbcast.lane.b32.xlu0 %v704, %s713
        %v715 = vpop.permute.xlu0 %714
        %s717 = sor.u32 256, 24
        %718 = vbcast.lane.b32.xlu0 %v704, %s717
        %v719 = vpop.permute.xlu0 %718
        %s721 = sor.u32 256, 32
        %722 = vbcast.lane.b32.xlu0 %v704, %s721
        %v723 = vpop.permute.xlu0 %722
        %s725 = sor.u32 256, 40
        %726 = vbcast.lane.b32.xlu0 %v704, %s725
        %v727 = vpop.permute.xlu0 %726
        %s729 = sor.u32 256, 48
        %730 = vbcast.lane.b32.xlu0 %v704, %s729
        %v731 = vpop.permute.xlu0 %730
        %s733 = sor.u32 256, 56
        %734 = vbcast.lane.b32.xlu0 %v704, %s733
        %v735 = vpop.permute.xlu0 %734
        %v736 = vmul.f32 %v189, %v707
        %v737 = vmul.f32 %v190, %v707
        %v738 = vmul.f32 %v191, %v711
        %v739 = vmul.f32 %v192, %v711
        %v740 = vmul.f32 %v193, %v715
        %v741 = vmul.f32 %v194, %v715
        %v742 = vmul.f32 %v195, %v719
        %v743 = vmul.f32 %v196, %v719
        %v744 = vmul.f32 %v197, %v723
        %v745 = vmul.f32 %v198, %v723
        %v746 = vmul.f32 %v199, %v727
        %v747 = vmul.f32 %v200, %v727
        %v748 = vmul.f32 %v201, %v731
        %v749 = vmul.f32 %v202, %v731
        %v750 = vmul.f32 %v203, %v735
        %v751 = vmul.f32 %v204, %v735
        %752 = vst [vmem:[%s188] sm:$0xff] %v736
        %753 = vst.msk [vmem:[%s188 + $0x8] sm:$0xff] %vm214, %v737
        %754 = vst [vmem:[%s188 + $0x10] sm:$0xff] %v738
        %755 = vst.msk [vmem:[%s188 + $0x18] sm:$0xff] %vm214, %v739
        %756 = vst [vmem:[%s188 + $0x20] sm:$0xff] %v740
        %757 = vst.msk [vmem:[%s188 + $0x28] sm:$0xff] %vm214, %v741
        %758 = vst [vmem:[%s188 + $0x30] sm:$0xff] %v742
        %759 = vst.msk [vmem:[%s188 + $0x38] sm:$0xff] %vm214, %v743
        %760 = vst [vmem:[%s188 + $0x40] sm:$0xff] %v744
        %761 = vst.msk [vmem:[%s188 + $0x48] sm:$0xff] %vm214, %v745
        %762 = vst [vmem:[%s188 + $0x50] sm:$0xff] %v746
        %763 = vst.msk [vmem:[%s188 + $0x58] sm:$0xff] %vm214, %v747
        %764 = vst [vmem:[%s188 + $0x60] sm:$0xff] %v748
        %765 = vst.msk [vmem:[%s188 + $0x68] sm:$0xff] %vm214, %v749
        %766 = vst [vmem:[%s188 + $0x70] sm:$0xff] %v750
        %767 = vst.msk [vmem:[%s188 + $0x78] sm:$0xff] %vm214, %v751
        %s768 = sand.u32 %s96, 1
        %s769 = scalar_lea.sflag [#allocation4], %s768
        %s770 = sand.u32 %s96, 1
        %s771 = smul.addr %s770, 128
        %s772 = scalar_lea.vmem [#allocation5], %s771
        // Predicated region
        $region37: #{tpu_custom_call.1} parent=31 // pred_check
          %p773 = pneg %p106
        $region38: #{tpu_custom_call.1} parent=31 // pred_check_branch
          %775 = sbr.rel (%p773) target = $region40
        $region39: #{tpu_custom_call.1} parent=31 // pred_region
          %s777 = ssub.s32 2048, 2048
          %778 = vsyncadd %s769, %s777
          %s779 = smul.addr %s20, 16
          %s780 = smul.addr %s779, 128
          %s781 = scalar_lea.hbm %s3, %s780
          %s782 = sshll.u32 %s772, 4
          %s783 = int_to_ptr.vmem [resolvable:$true] %s782
          %788 = dma.vmem_to_hbm [thread:$0]  %s783, 2048, %s781, %s769, 256, 256, 16
        $region40: #{tpu_custom_call.1} parent=31 // pred_fallthru
          _
      $region32: #{tpu_custom_call.1} parent=5 // pred_fallthru
        _
      %p789 = scmp.le.s32.totalorder 2, %s15
      // Predicated region
      $region41: #{tpu_custom_call.1} parent=5 // pred_check
        %p790 = pneg %p789
      $region42: #{tpu_custom_call.1} parent=5 // pred_check_branch
        %792 = sbr.rel (%p790) target = $region44
      $region43: #{tpu_custom_call.1} parent=5 // pred_region
        %s793 = ssub.s32 %s15, 2
        // Predicated region
        $region45: #{tpu_custom_call.1} parent=43 // pred_check
          %p794 = pneg %p112
        $region46: #{tpu_custom_call.1} parent=43 // pred_check_branch
          %796 = sbr.rel (%p794) target = $region48
        $region47: #{tpu_custom_call.1} parent=43 // pred_region
          %s797 = sand.u32 %s97, 1
          %s798 = scalar_lea.sflag [#allocation4], %s797
          %s799 = sand.u32 %s97, 1
          %s800 = smul.addr %s799, 128
          %s801 = scalar_lea.vmem [#allocation5], %s800
          %802 = dma.done %s798, 2048
        $region48: #{tpu_custom_call.1} parent=43 // pred_fallthru
          _
      $region44: #{tpu_custom_call.1} parent=5 // pred_fallthru
        _
    $region6: #{tpu_custom_call.1} parent=1 // loop_footer
      %s19 = sadd.s32 1, %s15
    $region7: #{tpu_custom_call.1} parent=1 // loop_footer_branch
      %14 = sbr.rel target = $region3
    $region8: #{tpu_custom_call.1} parent=1 // loop_exit
      _
    %803 = vsyncpa [#allocation3], 1
    %s804 = scalar_lea.sflag [#allocation3], 1
    %805 = vsyncpa %s804, 1
    %806 = vsyncpa [#allocation4], 1
    %s807 = scalar_lea.sflag [#allocation4], 1
    %808 = vsyncpa %s807, 1

</llo_original>
